<compile_context>
chip_gen: v5e
topology: v5e:2x2
jax: 0.10.0
libtpu: 0.0.40
codegen_flags: <defaults>
</compile_context>

<pallas_src>
import functools

import jax
import jax.numpy as jnp
from jax.experimental import pallas as pl
from jax.experimental.pallas import tpu as pltpu


# ----------------------------------------------------------------------------
# helpers
# ----------------------------------------------------------------------------
def _round_up(x, m):
    return ((x + m - 1) // m) * m


def _pad2(a, rows, cols):
    """Zero-pad a 2D array up to (rows, cols)."""
    return jnp.pad(a, ((0, rows - a.shape[0]), (0, cols - a.shape[1])))


# ----------------------------------------------------------------------------
# Pallas kernel: shared bottoms + fused task heads + dot-product logits (2 tasks)
# ----------------------------------------------------------------------------
def shared_bottom_kernel(
    # tiled aggregated inputs [TILE_B, Kp]
    ua_ref, ia_ref,
    # user shared bottom (2 layers, padded)
    uw1_ref, ub1_ref, uw2_ref, ub2_ref,
    # item shared bottom (2 layers, padded)
    iw1_ref, ib1_ref, iw2_ref, ib2_ref,
    # fused heads: [Hp2, 2*Dp] weights, [1, 2*Dp] biases  (ctr | cvr halves)
    uhw_ref, uhb_ref, ihw_ref, ihb_ref,
    # output [TILE_B, 2]  (col 0 = ctr, col 1 = cvr)
    out_ref,
    *, head_pad,
):
    f32 = jnp.float32

    # ---- user shared bottom: Linear -> ReLU -> (Dropout=id) -> Linear -> ReLU ----
    u = jnp.dot(ua_ref[...], uw1_ref[...], preferred_element_type=f32) + ub1_ref[...]
    u = jnp.maximum(u, 0.0)
    u = jnp.dot(u, uw2_ref[...], preferred_element_type=f32) + ub2_ref[...]
    u = jnp.maximum(u, 0.0)

    # ---- item shared bottom ----
    it = jnp.dot(ia_ref[...], iw1_ref[...], preferred_element_type=f32) + ib1_ref[...]
    it = jnp.maximum(it, 0.0)
    it = jnp.dot(it, iw2_ref[...], preferred_element_type=f32) + ib2_ref[...]
    it = jnp.maximum(it, 0.0)

    # ---- fused task heads (ctr|cvr) + dot-product logits ----
    uh = jnp.dot(u, uhw_ref[...], preferred_element_type=f32) + uhb_ref[...]
    ih = jnp.dot(it, ihw_ref[...], preferred_element_type=f32) + ihb_ref[...]
    prod = uh * ih                                              # [TILE_B, 2*Dp]
    ctr = jnp.sum(prod[:, :head_pad], axis=1, keepdims=True)    # [TILE_B, 1]
    cvr = jnp.sum(prod[:, head_pad:], axis=1, keepdims=True)    # [TILE_B, 1]
    out_ref[...] = jnp.concatenate([ctr, cvr], axis=1)          # one store per tile


# ----------------------------------------------------------------------------
# Parameter prep: zero-pad to lane-aligned widths + fuse the per-task heads
# ----------------------------------------------------------------------------
def prepare_kernel_params(params, input_dims, hidden_dims, output_dim):
    assert len(hidden_dims) == 2, "kernel is specialized for 2 shared-bottom layers"
    LANE = 128
    kp_u = _round_up(input_dims["user"], LANE)
    kp_i = _round_up(input_dims["item"], LANE)
    hp = [_round_up(h, LANE) for h in hidden_dims]
    dp = _round_up(output_dim, 64)      # per-task head width; 2*dp is a multiple of 128

    def tower(group, k_pad):
        prev = k_pad
        ws, bs = [], []
        for li, h_pad in enumerate(hp, start=1):
            ws.append(_pad2(params[f"{group}_w{li}"], prev, h_pad))
            bs.append(_pad2(params[f"{group}_b{li}"], 1, h_pad))
            prev = h_pad
        return ws, bs

    user_ws, user_bs = tower("user", kp_u)
    item_ws, item_bs = tower("item", kp_i)

    def fused_head(pfx):
        w = jnp.concatenate(
            [_pad2(params[f"{pfx}_ctr_w"], hp[-1], dp),
             _pad2(params[f"{pfx}_cvr_w"], hp[-1], dp)], axis=1)
        b = jnp.concatenate(
            [_pad2(params[f"{pfx}_ctr_b"], 1, dp),
             _pad2(params[f"{pfx}_cvr_b"], 1, dp)], axis=1)
        return w, b

    uhw, uhb = fused_head("uhead")
    ihw, ihb = fused_head("ihead")

    return {
        "k_user": kp_u, "k_item": kp_i, "head_pad": dp,
        "user_ws": user_ws, "user_bs": user_bs,
        "item_ws": item_ws, "item_bs": item_bs,
        "uhead_w": uhw, "uhead_b": uhb, "ihead_w": ihw, "ihead_b": ihb,
    }


# ----------------------------------------------------------------------------
# Wrapper: grid over batch, weights resident, lane-dense single output slab
# ----------------------------------------------------------------------------
def shared_bottom_forward(user_agg, item_agg, kparams, *, tile_b=512):
    """Returns dict {'ctr': [B,1], 'cvr': [B,1]} (f32 logits)."""
    B = user_agg.shape[0]
    tile_b = max(8, min(tile_b, _round_up(B, 8)))
    b_pad = _round_up(B, tile_b)
    kp_u, kp_i, dp = kparams["k_user"], kparams["k_item"], kparams["head_pad"]

    ua = _pad2(user_agg.astype(jnp.float32), b_pad, kp_u)
    ia = _pad2(item_agg.astype(jnp.float32), b_pad, kp_i)

    uw1, uw2 = kparams["user_ws"]
    ub1, ub2 = kparams["user_bs"]
    iw1, iw2 = kparams["item_ws"]
    ib1, ib2 = kparams["item_bs"]
    uhw, uhb = kparams["uhead_w"], kparams["uhead_b"]
    ihw, ihb = kparams["ihead_w"], kparams["ihead_b"]

    operands = (ua, ia,
                uw1, ub1, uw2, ub2,
                iw1, ib1, iw2, ib2,
                uhw, uhb, ihw, ihb)

    def tiled_spec(arr):
        return pl.BlockSpec((tile_b, arr.shape[1]), lambda i: (i, 0))

    def resident_spec(arr):
        # constant block index -> stays in VMEM, no re-DMA across grid steps
        return pl.BlockSpec(arr.shape, lambda i: (0, 0))

    in_specs = [tiled_spec(ua), tiled_spec(ia)] + [resident_spec(a) for a in operands[2:]]
    out_specs = pl.BlockSpec((tile_b, 2), lambda i: (i, 0))
    grid = (b_pad // tile_b,)

    h1, h2 = uw1.shape[1], uw2.shape[1]
    flops = 2 * b_pad * (kp_u * h1 + kp_i * h1 + 2 * h1 * h2 + 2 * h2 * (2 * dp))
    bytes_accessed = 4 * (ua.size + ia.size + b_pad * 2 +
                          sum(int(a.size) for a in operands[2:]))
    cost = pl.CostEstimate(flops=int(flops), transcendentals=0,
                           bytes_accessed=int(bytes_accessed))

    out = pl.pallas_call(
        functools.partial(shared_bottom_kernel, head_pad=dp),
        out_shape=jax.ShapeDtypeStruct((b_pad, 2), jnp.float32),
        grid=grid,
        in_specs=in_specs,
        out_specs=out_specs,
        compiler_params=pltpu.CompilerParams(
            dimension_semantics=("parallel",)),   # shards batch tiles across v7x's 2 TCs
        cost_estimate=cost,
    )(*operands)

    return {"ctr": out[:B, 0:1], "cvr": out[:B, 1:2]}


# ----------------------------------------------------------------------------
# Glue: feature embedding + aggregation (plain JAX), deterministic param init
# ----------------------------------------------------------------------------
def _linear_params(key, in_dim, out_dim):
    kw, kb = jax.random.split(key)
    bound = 1.0 / jnp.sqrt(in_dim)
    w = jax.random.uniform(kw, (in_dim, out_dim), jnp.float32, -bound, bound)
    b = jax.random.uniform(kb, (1, out_dim), jnp.float32, -bound, bound)
    return w, b


def init_params(key, feature_configs, hidden_dims, output_dim):
    keys = iter(jax.random.split(key, 64))
    params = {}

    emb = {"user": {}, "item": {}}
    input_dims = {}
    for group in ("user", "item"):
        total = 0
        for name, cfg in feature_configs[group].items():
            if cfg["type"] == "categorical":
                emb[group][name] = (
                    jax.random.normal(next(keys),
                                      (cfg["vocab_size"], cfg["embedding_dim"]),
                                      jnp.float32) * 0.05
                )
                total += cfg["embedding_dim"]
            else:
                total += 1
        input_dims[group] = total
    params["embeddings"] = emb

    for group in ("user", "item"):
        prev = input_dims[group]
        for li, h in enumerate(hidden_dims, start=1):
            w, b = _linear_params(next(keys), prev, h)
            params[f"{group}_w{li}"] = w
            params[f"{group}_b{li}"] = b
            prev = h

    for pfx in ("uhead", "ihead"):
        for task in ("ctr", "cvr"):
            w, b = _linear_params(next(keys), hidden_dims[-1], output_dim)
            params[f"{pfx}_{task}_w"] = w
            params[f"{pfx}_{task}_b"] = b

    return params, input_dims


def embed_and_aggregate(features, feature_config, emb_tables):
    """FeatureEmbedding + _aggregate_embeddings: lookup categorical, pass-through numeric,
    concatenate along the last dim -> [B, total_dim]."""
    parts = []
    for name, cfg in feature_config.items():
        x = features[name]
        if cfg["type"] == "categorical":
            parts.append(jnp.take(emb_tables[name], x, axis=0))   # [B, emb_dim]
        else:
            parts.append(x.astype(jnp.float32).reshape(-1, 1))    # [B, 1]
    return jnp.concatenate(parts, axis=-1)


# ----------------------------------------------------------------------------
# Reference (pure JAX) for sanity check
# ----------------------------------------------------------------------------
def reference_forward(user_agg, item_agg, p):
    def mlp(x, w1, b1, w2, b2):
        x = jnp.maximum(x @ w1 + b1, 0.0)
        x = jnp.maximum(x @ w2 + b2, 0.0)
        return x

    u = mlp(user_agg, p["user_w1"], p["user_b1"], p["user_w2"], p["user_b2"])
    it = mlp(item_agg, p["item_w1"], p["item_b1"], p["item_w2"], p["item_b2"])
    out = {}
    for task in ("ctr", "cvr"):
        ue = u @ p[f"uhead_{task}_w"] + p[f"uhead_{task}_b"]
        ie = it @ p[f"ihead_{task}_w"] + p[f"ihead_{task}_b"]
        out[task] = jnp.sum(ue * ie, axis=1, keepdims=True)
    return out


# ----------------------------------------------------------------------------
# Main
# ----------------------------------------------------------------------------
if __name__ == "__main__":
    feature_configs = {
        "user": {
            "user_id": {"type": "categorical", "vocab_size": 50, "embedding_dim": 16},
            "user_gender": {"type": "categorical", "vocab_size": 3, "embedding_dim": 8},
            "user_age": {"type": "numerical"},
        },
        "item": {
            "item_id": {"type": "categorical", "vocab_size": 80, "embedding_dim": 16},
            "item_price": {"type": "numerical"},
        },
    }
    hidden_dims = [64, 32]
    output_dim = 16
    batch = 8

    key = jax.random.PRNGKey(0)
    kp, ku1, ku2, ku3, ki1, ki2 = jax.random.split(key, 6)
    params, input_dims = init_params(kp, feature_configs, hidden_dims, output_dim)

    user_features = {
        "user_id": jax.random.randint(ku1, (batch,), 0, 50),
        "user_gender": jax.random.randint(ku2, (batch,), 0, 3),
        "user_age": jax.random.uniform(ku3, (batch,), jnp.float32),
    }
    item_features = {
        "item_id": jax.random.randint(ki1, (batch,), 0, 80),
        "item_price": jax.random.uniform(ki2, (batch,), jnp.float32),
    }

    user_agg = embed_and_aggregate(user_features, feature_configs["user"],
                                   params["embeddings"]["user"])   # [8, 25]
    item_agg = embed_and_aggregate(item_features, feature_configs["item"],
                                   params["embeddings"]["item"])   # [8, 17]

    kernel_params = prepare_kernel_params(params, input_dims, hidden_dims, output_dim)
    preds = shared_bottom_forward(user_agg, item_agg, kernel_params)
    jax.block_until_ready(preds)

    # sanity check against pure-JAX reference
    ref = reference_forward(user_agg, item_agg, params)
    for task in ("ctr", "cvr"):
        assert preds[task].shape == (batch, 1)
        err = float(jnp.max(jnp.abs(preds[task] - ref[task])))
        assert err < 1e-4, f"{task} mismatch: {err}"

    print("KERNEL_OK")
</pallas_src>

<mosaic_0001>
module attributes {stable_mosaic.version = 11 : i64} {
  func.func @shared_bottom_kernel(%arg0: i32, %arg1: memref<8x128xf32, #tpu.memory_space<vmem>>, %arg2: memref<8x128xf32, #tpu.memory_space<vmem>>, %arg3: memref<128x128xf32, #tpu.memory_space<vmem>>, %arg4: memref<1x128xf32, #tpu.memory_space<vmem>>, %arg5: memref<128x128xf32, #tpu.memory_space<vmem>>, %arg6: memref<1x128xf32, #tpu.memory_space<vmem>>, %arg7: memref<128x128xf32, #tpu.memory_space<vmem>>, %arg8: memref<1x128xf32, #tpu.memory_space<vmem>>, %arg9: memref<128x128xf32, #tpu.memory_space<vmem>>, %arg10: memref<1x128xf32, #tpu.memory_space<vmem>>, %arg11: memref<128x128xf32, #tpu.memory_space<vmem>>, %arg12: memref<1x128xf32, #tpu.memory_space<vmem>>, %arg13: memref<128x128xf32, #tpu.memory_space<vmem>>, %arg14: memref<1x128xf32, #tpu.memory_space<vmem>>, %arg15: memref<8x2xf32, #tpu.memory_space<vmem>>) attributes {dimension_semantics = [#tpu.dimension_semantics<parallel>], iteration_bounds = array<i64: 1>, scalar_prefetch = 0 : i64, scratch_operands = 0 : i64, tpu.core_type = #tpu.core_type<tc>, window_params = [{transform_indices = @transform_0, window_bounds = array<i64: 8, 128>}, {transform_indices = @transform_1, window_bounds = array<i64: 8, 128>}, {pipeline_mode = #tpu.pipeline_mode<synchronous>, transform_indices = @transform_2, window_bounds = array<i64: 128, 128>}, {pipeline_mode = #tpu.pipeline_mode<synchronous>, transform_indices = @transform_3, window_bounds = array<i64: 1, 128>}, {pipeline_mode = #tpu.pipeline_mode<synchronous>, transform_indices = @transform_4, window_bounds = array<i64: 128, 128>}, {pipeline_mode = #tpu.pipeline_mode<synchronous>, transform_indices = @transform_5, window_bounds = array<i64: 1, 128>}, {pipeline_mode = #tpu.pipeline_mode<synchronous>, transform_indices = @transform_6, window_bounds = array<i64: 128, 128>}, {pipeline_mode = #tpu.pipeline_mode<synchronous>, transform_indices = @transform_7, window_bounds = array<i64: 1, 128>}, {pipeline_mode = #tpu.pipeline_mode<synchronous>, transform_indices = @transform_8, window_bounds = array<i64: 128, 128>}, {pipeline_mode = #tpu.pipeline_mode<synchronous>, transform_indices = @transform_9, window_bounds = array<i64: 1, 128>}, {pipeline_mode = #tpu.pipeline_mode<synchronous>, transform_indices = @transform_10, window_bounds = array<i64: 128, 128>}, {pipeline_mode = #tpu.pipeline_mode<synchronous>, transform_indices = @transform_11, window_bounds = array<i64: 1, 128>}, {pipeline_mode = #tpu.pipeline_mode<synchronous>, transform_indices = @transform_12, window_bounds = array<i64: 128, 128>}, {pipeline_mode = #tpu.pipeline_mode<synchronous>, transform_indices = @transform_13, window_bounds = array<i64: 1, 128>}, {transform_indices = @transform_14, window_bounds = array<i64: 8, 2>}]} {
    %c0 = arith.constant 0 : index
    %c0_0 = arith.constant 0 : index
    %0 = vector.load %arg1[%c0, %c0_0] : memref<8x128xf32, #tpu.memory_space<vmem>>, vector<8x128xf32>
    %c0_1 = arith.constant 0 : index
    %c0_2 = arith.constant 0 : index
    %1 = vector.load %arg3[%c0_1, %c0_2] : memref<128x128xf32, #tpu.memory_space<vmem>>, vector<128x128xf32>
    %cst = arith.constant dense<0.000000e+00> : vector<8x128xf32>
    %2 = tpu.matmul %0, %1, %cst {dimension_numbers = #tpu.dot_dimension_numbers<[1], [0], [0], [1], [0, 0, 1, 1], [], []>} : vector<8x128xf32>, vector<128x128xf32>, vector<8x128xf32> -> vector<8x128xf32>
    %c0_3 = arith.constant 0 : index
    %c0_4 = arith.constant 0 : index
    %3 = vector.load %arg4[%c0_3, %c0_4] : memref<1x128xf32, #tpu.memory_space<vmem>>, vector<1x128xf32>
    %4 = vector.broadcast %3 : vector<1x128xf32> to vector<8x128xf32>
    %5 = arith.addf %2, %4 : vector<8x128xf32>
    %cst_5 = arith.constant 0.000000e+00 : f32
    %6 = vector.broadcast %cst_5 : f32 to vector<8x128xf32>
    %7 = arith.maximumf %5, %6 : vector<8x128xf32>
    %c0_6 = arith.constant 0 : index
    %c0_7 = arith.constant 0 : index
    %8 = vector.load %arg5[%c0_6, %c0_7] : memref<128x128xf32, #tpu.memory_space<vmem>>, vector<128x128xf32>
    %cst_8 = arith.constant dense<0.000000e+00> : vector<8x128xf32>
    %9 = tpu.matmul %7, %8, %cst_8 {dimension_numbers = #tpu.dot_dimension_numbers<[1], [0], [0], [1], [0, 0, 1, 1], [], []>} : vector<8x128xf32>, vector<128x128xf32>, vector<8x128xf32> -> vector<8x128xf32>
    %c0_9 = arith.constant 0 : index
    %c0_10 = arith.constant 0 : index
    %10 = vector.load %arg6[%c0_9, %c0_10] : memref<1x128xf32, #tpu.memory_space<vmem>>, vector<1x128xf32>
    %11 = vector.broadcast %10 : vector<1x128xf32> to vector<8x128xf32>
    %12 = arith.addf %9, %11 : vector<8x128xf32>
    %cst_11 = arith.constant 0.000000e+00 : f32
    %13 = vector.broadcast %cst_11 : f32 to vector<8x128xf32>
    %14 = arith.maximumf %12, %13 : vector<8x128xf32>
    %c0_12 = arith.constant 0 : index
    %c0_13 = arith.constant 0 : index
    %15 = vector.load %arg2[%c0_12, %c0_13] : memref<8x128xf32, #tpu.memory_space<vmem>>, vector<8x128xf32>
    %c0_14 = arith.constant 0 : index
    %c0_15 = arith.constant 0 : index
    %16 = vector.load %arg7[%c0_14, %c0_15] : memref<128x128xf32, #tpu.memory_space<vmem>>, vector<128x128xf32>
    %cst_16 = arith.constant dense<0.000000e+00> : vector<8x128xf32>
    %17 = tpu.matmul %15, %16, %cst_16 {dimension_numbers = #tpu.dot_dimension_numbers<[1], [0], [0], [1], [0, 0, 1, 1], [], []>} : vector<8x128xf32>, vector<128x128xf32>, vector<8x128xf32> -> vector<8x128xf32>
    %c0_17 = arith.constant 0 : index
    %c0_18 = arith.constant 0 : index
    %18 = vector.load %arg8[%c0_17, %c0_18] : memref<1x128xf32, #tpu.memory_space<vmem>>, vector<1x128xf32>
    %19 = vector.broadcast %18 : vector<1x128xf32> to vector<8x128xf32>
    %20 = arith.addf %17, %19 : vector<8x128xf32>
    %cst_19 = arith.constant 0.000000e+00 : f32
    %21 = vector.broadcast %cst_19 : f32 to vector<8x128xf32>
    %22 = arith.maximumf %20, %21 : vector<8x128xf32>
    %c0_20 = arith.constant 0 : index
    %c0_21 = arith.constant 0 : index
    %23 = vector.load %arg9[%c0_20, %c0_21] : memref<128x128xf32, #tpu.memory_space<vmem>>, vector<128x128xf32>
    %cst_22 = arith.constant dense<0.000000e+00> : vector<8x128xf32>
    %24 = tpu.matmul %22, %23, %cst_22 {dimension_numbers = #tpu.dot_dimension_numbers<[1], [0], [0], [1], [0, 0, 1, 1], [], []>} : vector<8x128xf32>, vector<128x128xf32>, vector<8x128xf32> -> vector<8x128xf32>
    %c0_23 = arith.constant 0 : index
    %c0_24 = arith.constant 0 : index
    %25 = vector.load %arg10[%c0_23, %c0_24] : memref<1x128xf32, #tpu.memory_space<vmem>>, vector<1x128xf32>
    %26 = vector.broadcast %25 : vector<1x128xf32> to vector<8x128xf32>
    %27 = arith.addf %24, %26 : vector<8x128xf32>
    %cst_25 = arith.constant 0.000000e+00 : f32
    %28 = vector.broadcast %cst_25 : f32 to vector<8x128xf32>
    %29 = arith.maximumf %27, %28 : vector<8x128xf32>
    %c0_26 = arith.constant 0 : index
    %c0_27 = arith.constant 0 : index
    %30 = vector.load %arg11[%c0_26, %c0_27] : memref<128x128xf32, #tpu.memory_space<vmem>>, vector<128x128xf32>
    %cst_28 = arith.constant dense<0.000000e+00> : vector<8x128xf32>
    %31 = tpu.matmul %14, %30, %cst_28 {dimension_numbers = #tpu.dot_dimension_numbers<[1], [0], [0], [1], [0, 0, 1, 1], [], []>} : vector<8x128xf32>, vector<128x128xf32>, vector<8x128xf32> -> vector<8x128xf32>
    %c0_29 = arith.constant 0 : index
    %c0_30 = arith.constant 0 : index
    %32 = vector.load %arg12[%c0_29, %c0_30] : memref<1x128xf32, #tpu.memory_space<vmem>>, vector<1x128xf32>
    %33 = vector.broadcast %32 : vector<1x128xf32> to vector<8x128xf32>
    %34 = arith.addf %31, %33 : vector<8x128xf32>
    %c0_31 = arith.constant 0 : index
    %c0_32 = arith.constant 0 : index
    %35 = vector.load %arg13[%c0_31, %c0_32] : memref<128x128xf32, #tpu.memory_space<vmem>>, vector<128x128xf32>
    %cst_33 = arith.constant dense<0.000000e+00> : vector<8x128xf32>
    %36 = tpu.matmul %29, %35, %cst_33 {dimension_numbers = #tpu.dot_dimension_numbers<[1], [0], [0], [1], [0, 0, 1, 1], [], []>} : vector<8x128xf32>, vector<128x128xf32>, vector<8x128xf32> -> vector<8x128xf32>
    %c0_34 = arith.constant 0 : index
    %c0_35 = arith.constant 0 : index
    %37 = vector.load %arg14[%c0_34, %c0_35] : memref<1x128xf32, #tpu.memory_space<vmem>>, vector<1x128xf32>
    %38 = vector.broadcast %37 : vector<1x128xf32> to vector<8x128xf32>
    %39 = arith.addf %36, %38 : vector<8x128xf32>
    %40 = arith.mulf %34, %39 : vector<8x128xf32>
    %41 = vector.extract_strided_slice %40 {offsets = [0, 0], sizes = [8, 64], strides = [1, 1]} : vector<8x128xf32> to vector<8x64xf32>
    %cst_36 = arith.constant dense<0.000000e+00> : vector<8xf32>
    %42 = vector.multi_reduction <add>, %41, %cst_36 [1] : vector<8x64xf32> to vector<8xf32>
    %43 = vector.shape_cast %42 : vector<8xf32> to vector<8x1xf32>
    %44 = vector.extract_strided_slice %40 {offsets = [0, 64], sizes = [8, 64], strides = [1, 1]} : vector<8x128xf32> to vector<8x64xf32>
    %cst_37 = arith.constant dense<0.000000e+00> : vector<8xf32>
    %45 = vector.multi_reduction <add>, %44, %cst_37 [1] : vector<8x64xf32> to vector<8xf32>
    %46 = vector.shape_cast %45 : vector<8xf32> to vector<8x1xf32>
    %47 = tpu.concatenate %43, %46 in 1 : vector<8x1xf32>, vector<8x1xf32> -> vector<8x2xf32>
    %c0_38 = arith.constant 0 : index
    %c0_39 = arith.constant 0 : index
    %48 = vector.load %arg15[%c0_38, %c0_39] : memref<8x2xf32, #tpu.memory_space<vmem>>, vector<8x2xf32>
    tpu.vector_store %arg15[%c0_38, %c0_39], %47 {strides = array<i32>} : memref<8x2xf32, #tpu.memory_space<vmem>>, vector<8x2xf32>,
    return
  }
  func.func @transform_0(%arg0: i32) -> (i32, i32) {
    %c0_i32 = arith.constant 0 : i32
    %c0_i32_0 = arith.constant 0 : i32
    return %arg0, %c0_i32 : i32, i32
  }
  func.func @transform_1(%arg0: i32) -> (i32, i32) {
    %c0_i32 = arith.constant 0 : i32
    %c0_i32_0 = arith.constant 0 : i32
    return %arg0, %c0_i32 : i32, i32
  }
  func.func @transform_2(%arg0: i32) -> (i32, i32) {
    %c0_i32 = arith.constant 0 : i32
    %c0_i32_0 = arith.constant 0 : i32
    %c0_i32_1 = arith.constant 0 : i32
    return %c0_i32, %c0_i32_0 : i32, i32
  }
  func.func @transform_3(%arg0: i32) -> (i32, i32) {
    %c0_i32 = arith.constant 0 : i32
    %c0_i32_0 = arith.constant 0 : i32
    %c0_i32_1 = arith.constant 0 : i32
    return %c0_i32, %c0_i32_0 : i32, i32
  }
  func.func @transform_4(%arg0: i32) -> (i32, i32) {
    %c0_i32 = arith.constant 0 : i32
    %c0_i32_0 = arith.constant 0 : i32
    %c0_i32_1 = arith.constant 0 : i32
    return %c0_i32, %c0_i32_0 : i32, i32
  }
  func.func @transform_5(%arg0: i32) -> (i32, i32) {
    %c0_i32 = arith.constant 0 : i32
    %c0_i32_0 = arith.constant 0 : i32
    %c0_i32_1 = arith.constant 0 : i32
    return %c0_i32, %c0_i32_0 : i32, i32
  }
  func.func @transform_6(%arg0: i32) -> (i32, i32) {
    %c0_i32 = arith.constant 0 : i32
    %c0_i32_0 = arith.constant 0 : i32
    %c0_i32_1 = arith.constant 0 : i32
    return %c0_i32, %c0_i32_0 : i32, i32
  }
  func.func @transform_7(%arg0: i32) -> (i32, i32) {
    %c0_i32 = arith.constant 0 : i32
    %c0_i32_0 = arith.constant 0 : i32
    %c0_i32_1 = arith.constant 0 : i32
    return %c0_i32, %c0_i32_0 : i32, i32
  }
  func.func @transform_8(%arg0: i32) -> (i32, i32) {
    %c0_i32 = arith.constant 0 : i32
    %c0_i32_0 = arith.constant 0 : i32
    %c0_i32_1 = arith.constant 0 : i32
    return %c0_i32, %c0_i32_0 : i32, i32
  }
  func.func @transform_9(%arg0: i32) -> (i32, i32) {
    %c0_i32 = arith.constant 0 : i32
    %c0_i32_0 = arith.constant 0 : i32
    %c0_i32_1 = arith.constant 0 : i32
    return %c0_i32, %c0_i32_0 : i32, i32
  }
  func.func @transform_10(%arg0: i32) -> (i32, i32) {
    %c0_i32 = arith.constant 0 : i32
    %c0_i32_0 = arith.constant 0 : i32
    %c0_i32_1 = arith.constant 0 : i32
    return %c0_i32, %c0_i32_0 : i32, i32
  }
  func.func @transform_11(%arg0: i32) -> (i32, i32) {
    %c0_i32 = arith.constant 0 : i32
    %c0_i32_0 = arith.constant 0 : i32
    %c0_i32_1 = arith.constant 0 : i32
    return %c0_i32, %c0_i32_0 : i32, i32
  }
  func.func @transform_12(%arg0: i32) -> (i32, i32) {
    %c0_i32 = arith.constant 0 : i32
    %c0_i32_0 = arith.constant 0 : i32
    %c0_i32_1 = arith.constant 0 : i32
    return %c0_i32, %c0_i32_0 : i32, i32
  }
  func.func @transform_13(%arg0: i32) -> (i32, i32) {
    %c0_i32 = arith.constant 0 : i32
    %c0_i32_0 = arith.constant 0 : i32
    %c0_i32_1 = arith.constant 0 : i32
    return %c0_i32, %c0_i32_0 : i32, i32
  }
  func.func @transform_14(%arg0: i32) -> (i32, i32) {
    %c0_i32 = arith.constant 0 : i32
    %c0_i32_0 = arith.constant 0 : i32
    return %arg0, %c0_i32 : i32, i32
  }
}

</mosaic_0001>

<llo_original>
// kernel: tpu_custom_call.1
$region0: #{tpu_custom_call.1}
  #allocation0 [shape = 'u32[]', space=smem, size = 0x4, offset = 0x4, fixed_abs, tag = 'smem constant byte address 0x4 - core index']
  #allocation1 [shape = 'u32[72,128]{1,0:T(1,128)}', space=vmem, size = 0x9000, scoped, tag = 'internal scratch']
  %s0 = inlined_call_operand.hbm [shape: f32[8,128], index: 0, kind: input, shape index: {}]
  %s1 = inlined_call_operand.hbm [shape: f32[8,128], index: 1, kind: input, shape index: {}]
  %s2 = inlined_call_operand.hbm [shape: f32[128,128], index: 2, kind: input, shape index: {}]
  %s3 = inlined_call_operand.vmem [shape: f32[1,128], index: 3, kind: input, shape index: {}]
  %s4 = inlined_call_operand.hbm [shape: f32[128,128], index: 4, kind: input, shape index: {}]
  %s5 = inlined_call_operand.vmem [shape: f32[1,128], index: 5, kind: input, shape index: {}]
  %s6 = inlined_call_operand.hbm [shape: f32[128,128], index: 6, kind: input, shape index: {}]
  %s7 = inlined_call_operand.vmem [shape: f32[1,128], index: 7, kind: input, shape index: {}]
  %s8 = inlined_call_operand.hbm [shape: f32[128,128], index: 8, kind: input, shape index: {}]
  %s9 = inlined_call_operand.vmem [shape: f32[1,128], index: 9, kind: input, shape index: {}]
  %s10 = inlined_call_operand.hbm [shape: f32[128,128], index: 10, kind: input, shape index: {}]
  %s11 = inlined_call_operand.vmem [shape: f32[1,128], index: 11, kind: input, shape index: {}]
  %s12 = inlined_call_operand.hbm [shape: f32[128,128], index: 12, kind: input, shape index: {}]
  %s13 = inlined_call_operand.vmem [shape: f32[1,128], index: 13, kind: input, shape index: {}]
  %s14 = inlined_call_operand.vmem [shape: f32[8,2], index: 14, kind: output, shape index: {}]
  %s15 = sld [smem:[#allocation0]]
  $region98: #{tpu_custom_call.1} parent=0
    _
  %s17 = ssub.s32 1, %s15
  %s18 = scalar_select 0, %s17, %s15
  $region1: #{tpu_custom_call.1} parent=0
    #allocation2 [shape = 'u8[4096]{0}', space=vmem, size = 0x1000, scoped, tag = 'input window, operand 0, single buffered']
    #allocation3 [shape = 's32[1]{0}', space=sflag, size = 0x4, scoped, tag = 'scoped memory for tpu_custom_call.1']
    #allocation4 [shape = 'u8[4096]{0}', space=vmem, size = 0x1000, scoped, tag = 'input window, operand 1, single buffered']
    #allocation5 [shape = 's32[1]{0}', space=sflag, size = 0x4, scoped, tag = 'scoped memory for tpu_custom_call.1']
    #allocation6 [shape = 'u8[65536]{0}', space=vmem, size = 0x10000, scoped, tag = 'input window, operand 2, single buffered']
    #allocation7 [shape = 'u8[65536]{0}', space=vmem, size = 0x10000, scoped, tag = 'input window, operand 4, single buffered']
    #allocation8 [shape = 's32[1]{0}', space=sflag, size = 0x4, scoped, tag = 'scoped memory for tpu_custom_call.1']
    #allocation9 [shape = 'u8[65536]{0}', space=vmem, size = 0x10000, scoped, tag = 'input window, operand 6, single buffered']
    #allocation10 [shape = 'u8[65536]{0}', space=vmem, size = 0x10000, scoped, tag = 'input window, operand 8, single buffered']
    #allocation11 [shape = 's32[1]{0}', space=sflag, size = 0x4, scoped, tag = 'scoped memory for tpu_custom_call.1']
    #allocation12 [shape = 'u8[65536]{0}', space=vmem, size = 0x10000, scoped, tag = 'input window, operand 10, single buffered']
    #allocation13 [shape = 'u8[65536]{0}', space=vmem, size = 0x10000, scoped, tag = 'input window, operand 12, single buffered']
    #allocation14 [shape = 's32[1]{0}', space=sflag, size = 0x4, scoped, tag = 'scoped memory for tpu_custom_call.1']
    %19 = vsyncpa [#allocation3], 0
    %20 = vsyncpa [#allocation5], 0
    %21 = vsyncpa [#allocation8], 0
    %22 = vsyncpa [#allocation11], 0
    %23 = vsyncpa [#allocation14], 0
    // Predicated region
    $region2: #{tpu_custom_call.1} parent=1 // pred_check
      _
    $region3: #{tpu_custom_call.1} parent=1 // pred_check_branch
      %25 = sbr.rel (0) target = $region5
    $region4: #{tpu_custom_call.1} parent=1 // pred_region
      %27 = vsyncadd [#allocation3], 0
      %s29 = sshll.u32 %s0, 4
      %s30 = int_to_ptr.hbm [resolvable:$true] %s29
      %s31 = sshll.u32 [#allocation2], 4
      %s32 = int_to_ptr.vmem [resolvable:$true] %s31
      %34 = dma.hbm_to_vmem [thread:$0]  %s30, 128, %s32, [#allocation3]
    $region5: #{tpu_custom_call.1} parent=1 // pred_fallthru
      _
    // Predicated region
    $region6: #{tpu_custom_call.1} parent=1 // pred_check
      _
    $region7: #{tpu_custom_call.1} parent=1 // pred_check_branch
      %36 = sbr.rel (0) target = $region9
    $region8: #{tpu_custom_call.1} parent=1 // pred_region
      %38 = vsyncadd [#allocation5], 0
      %s40 = sshll.u32 %s1, 4
      %s41 = int_to_ptr.hbm [resolvable:$true] %s40
      %s42 = sshll.u32 [#allocation4], 4
      %s43 = int_to_ptr.vmem [resolvable:$true] %s42
      %45 = dma.hbm_to_vmem [thread:$0]  %s41, 128, %s43, [#allocation5]
    $region9: #{tpu_custom_call.1} parent=1 // pred_fallthru
      _
    // Predicated region
    $region10: #{tpu_custom_call.1} parent=1 // pred_check
      _
    $region11: #{tpu_custom_call.1} parent=1 // pred_check_branch
      %47 = sbr.rel (0) target = $region13
    $region12: #{tpu_custom_call.1} parent=1 // pred_region
      %49 = vsyncadd [#allocation5], 0
      %s50 = sshll.u32 %s2, 4
      %s51 = int_to_ptr.hbm [resolvable:$true] %s50
      %s52 = sshll.u32 [#allocation6], 4
      %s53 = int_to_ptr.vmem [resolvable:$true] %s52
      %58 = dma.hbm_to_vmem [thread:$0]  %s51, 2048, %s53, [#allocation5], 128, 128, 8
    $region13: #{tpu_custom_call.1} parent=1 // pred_fallthru
      _
    // Predicated region
    $region14: #{tpu_custom_call.1} parent=1 // pred_check
      _
    $region15: #{tpu_custom_call.1} parent=1 // pred_check_branch
      %60 = sbr.rel (0) target = $region17
    $region16: #{tpu_custom_call.1} parent=1 // pred_region
      _
    $region17: #{tpu_custom_call.1} parent=1 // pred_fallthru
      _
    // Predicated region
    $region18: #{tpu_custom_call.1} parent=1 // pred_check
      _
    $region19: #{tpu_custom_call.1} parent=1 // pred_check_branch
      %62 = sbr.rel (0) target = $region21
    $region20: #{tpu_custom_call.1} parent=1 // pred_region
      %64 = vsyncadd [#allocation8], 0
      %s65 = sshll.u32 %s4, 4
      %s66 = int_to_ptr.hbm [resolvable:$true] %s65
      %s67 = sshll.u32 [#allocation7], 4
      %s68 = int_to_ptr.vmem [resolvable:$true] %s67
      %73 = dma.hbm_to_vmem [thread:$0]  %s66, 2048, %s68, [#allocation8], 128, 128, 8
    $region21: #{tpu_custom_call.1} parent=1 // pred_fallthru
      _
    // Predicated region
    $region22: #{tpu_custom_call.1} parent=1 // pred_check
      _
    $region23: #{tpu_custom_call.1} parent=1 // pred_check_branch
      %75 = sbr.rel (0) target = $region25
    $region24: #{tpu_custom_call.1} parent=1 // pred_region
      _
    $region25: #{tpu_custom_call.1} parent=1 // pred_fallthru
      _
    // Predicated region
    $region26: #{tpu_custom_call.1} parent=1 // pred_check
      _
    $region27: #{tpu_custom_call.1} parent=1 // pred_check_branch
      %77 = sbr.rel (0) target = $region29
    $region28: #{tpu_custom_call.1} parent=1 // pred_region
      %79 = vsyncadd [#allocation8], 0
      %s80 = sshll.u32 %s6, 4
      %s81 = int_to_ptr.hbm [resolvable:$true] %s80
      %s82 = sshll.u32 [#allocation9], 4
      %s83 = int_to_ptr.vmem [resolvable:$true] %s82
      %88 = dma.hbm_to_vmem [thread:$0]  %s81, 2048, %s83, [#allocation8], 128, 128, 8
    $region29: #{tpu_custom_call.1} parent=1 // pred_fallthru
      _
    // Predicated region
    $region30: #{tpu_custom_call.1} parent=1 // pred_check
      _
    $region31: #{tpu_custom_call.1} parent=1 // pred_check_branch
      %90 = sbr.rel (0) target = $region33
    $region32: #{tpu_custom_call.1} parent=1 // pred_region
      _
    $region33: #{tpu_custom_call.1} parent=1 // pred_fallthru
      _
    // Predicated region
    $region34: #{tpu_custom_call.1} parent=1 // pred_check
      _
    $region35: #{tpu_custom_call.1} parent=1 // pred_check_branch
      %92 = sbr.rel (0) target = $region37
    $region36: #{tpu_custom_call.1} parent=1 // pred_region
      %94 = vsyncadd [#allocation11], 0
      %s95 = sshll.u32 %s8, 4
      %s96 = int_to_ptr.hbm [resolvable:$true] %s95
      %s97 = sshll.u32 [#allocation10], 4
      %s98 = int_to_ptr.vmem [resolvable:$true] %s97
      %103 = dma.hbm_to_vmem [thread:$0]  %s96, 2048, %s98, [#allocation11], 128, 128, 8
    $region37: #{tpu_custom_call.1} parent=1 // pred_fallthru
      _
    // Predicated region
    $region38: #{tpu_custom_call.1} parent=1 // pred_check
      _
    $region39: #{tpu_custom_call.1} parent=1 // pred_check_branch
      %105 = sbr.rel (0) target = $region41
    $region40: #{tpu_custom_call.1} parent=1 // pred_region
      _
    $region41: #{tpu_custom_call.1} parent=1 // pred_fallthru
      _
    // Predicated region
    $region42: #{tpu_custom_call.1} parent=1 // pred_check
      _
    $region43: #{tpu_custom_call.1} parent=1 // pred_check_branch
      %107 = sbr.rel (0) target = $region45
    $region44: #{tpu_custom_call.1} parent=1 // pred_region
      %109 = vsyncadd [#allocation11], 0
      %s110 = sshll.u32 %s10, 4
      %s111 = int_to_ptr.hbm [resolvable:$true] %s110
      %s112 = sshll.u32 [#allocation12], 4
      %s113 = int_to_ptr.vmem [resolvable:$true] %s112
      %118 = dma.hbm_to_vmem [thread:$0]  %s111, 2048, %s113, [#allocation11], 128, 128, 8
    $region45: #{tpu_custom_call.1} parent=1 // pred_fallthru
      _
    // Predicated region
    $region46: #{tpu_custom_call.1} parent=1 // pred_check
      _
    $region47: #{tpu_custom_call.1} parent=1 // pred_check_branch
      %120 = sbr.rel (0) target = $region49
    $region48: #{tpu_custom_call.1} parent=1 // pred_region
      _
    $region49: #{tpu_custom_call.1} parent=1 // pred_fallthru
      _
    // Predicated region
    $region50: #{tpu_custom_call.1} parent=1 // pred_check
      _
    $region51: #{tpu_custom_call.1} parent=1 // pred_check_branch
      %122 = sbr.rel (0) target = $region53
    $region52: #{tpu_custom_call.1} parent=1 // pred_region
      %124 = vsyncadd [#allocation14], 0
      %s125 = sshll.u32 %s12, 4
      %s126 = int_to_ptr.hbm [resolvable:$true] %s125
      %s127 = sshll.u32 [#allocation13], 4
      %s128 = int_to_ptr.vmem [resolvable:$true] %s127
      %133 = dma.hbm_to_vmem [thread:$0]  %s126, 2048, %s128, [#allocation14], 128, 128, 8
    $region53: #{tpu_custom_call.1} parent=1 // pred_fallthru
      _
    // Predicated region
    $region54: #{tpu_custom_call.1} parent=1 // pred_check
      _
    $region55: #{tpu_custom_call.1} parent=1 // pred_check_branch
      %135 = sbr.rel (0) target = $region57
    $region56: #{tpu_custom_call.1} parent=1 // pred_region
      _
    $region57: #{tpu_custom_call.1} parent=1 // pred_fallthru
      _
    // Predicated region
    $region58: #{tpu_custom_call.1} parent=1 // pred_check
      _
    $region59: #{tpu_custom_call.1} parent=1 // pred_check_branch
      %137 = sbr.rel (0) target = $region61
    $region60: #{tpu_custom_call.1} parent=1 // pred_region
      %139 = dma.done [#allocation3], 128
    $region61: #{tpu_custom_call.1} parent=1 // pred_fallthru
      _
    // Predicated region
    $region62: #{tpu_custom_call.1} parent=1 // pred_check
      _
    $region63: #{tpu_custom_call.1} parent=1 // pred_check_branch
      %141 = sbr.rel (0) target = $region65
    $region64: #{tpu_custom_call.1} parent=1 // pred_region
      %143 = dma.done [#allocation5], 128
    $region65: #{tpu_custom_call.1} parent=1 // pred_fallthru
      _
    // Predicated region
    $region66: #{tpu_custom_call.1} parent=1 // pred_check
      _
    $region67: #{tpu_custom_call.1} parent=1 // pred_check_branch
      %145 = sbr.rel (0) target = $region69
    $region68: #{tpu_custom_call.1} parent=1 // pred_region
      %147 = dma.done [#allocation5], 2048
    $region69: #{tpu_custom_call.1} parent=1 // pred_fallthru
      _
    // Predicated region
    $region70: #{tpu_custom_call.1} parent=1 // pred_check
      _
    $region71: #{tpu_custom_call.1} parent=1 // pred_check_branch
      %149 = sbr.rel (0) target = $region73
    $region72: #{tpu_custom_call.1} parent=1 // pred_region
      %151 = dma.done [#allocation8], 2048
    $region73: #{tpu_custom_call.1} parent=1 // pred_fallthru
      _
    // Predicated region
    $region74: #{tpu_custom_call.1} parent=1 // pred_check
      _
    $region75: #{tpu_custom_call.1} parent=1 // pred_check_branch
      %153 = sbr.rel (0) target = $region77
    $region76: #{tpu_custom_call.1} parent=1 // pred_region
      %155 = dma.done [#allocation8], 2048
    $region77: #{tpu_custom_call.1} parent=1 // pred_fallthru
      _
    // Predicated region
    $region78: #{tpu_custom_call.1} parent=1 // pred_check
      _
    $region79: #{tpu_custom_call.1} parent=1 // pred_check_branch
      %157 = sbr.rel (0) target = $region81
    $region80: #{tpu_custom_call.1} parent=1 // pred_region
      %159 = dma.done [#allocation11], 2048
    $region81: #{tpu_custom_call.1} parent=1 // pred_fallthru
      _
    // Predicated region
    $region82: #{tpu_custom_call.1} parent=1 // pred_check
      _
    $region83: #{tpu_custom_call.1} parent=1 // pred_check_branch
      %161 = sbr.rel (0) target = $region85
    $region84: #{tpu_custom_call.1} parent=1 // pred_region
      %163 = dma.done [#allocation11], 2048
    $region85: #{tpu_custom_call.1} parent=1 // pred_fallthru
      _
    // Predicated region
    $region86: #{tpu_custom_call.1} parent=1 // pred_check
      _
    $region87: #{tpu_custom_call.1} parent=1 // pred_check_branch
      %165 = sbr.rel (0) target = $region89
    $region88: #{tpu_custom_call.1} parent=1 // pred_region
      %167 = dma.done [#allocation14], 2048
    $region89: #{tpu_custom_call.1} parent=1 // pred_fallthru
      _
    %v168 = vld [vmem:[#allocation2] sm:$0xff]
    %v169 = vld [vmem:[#allocation6] sm:$0xff]
    %v170 = vld [vmem:[#allocation6 + $0x8] sm:$0xff]
    %v171 = vld [vmem:[#allocation6 + $0x10] sm:$0xff]
    %v172 = vld [vmem:[#allocation6 + $0x18] sm:$0xff]
    %v173 = vld [vmem:[#allocation6 + $0x20] sm:$0xff]
    %v174 = vld [vmem:[#allocation6 + $0x28] sm:$0xff]
    %v175 = vld [vmem:[#allocation6 + $0x30] sm:$0xff]
    %v176 = vld [vmem:[#allocation6 + $0x38] sm:$0xff]
    %v177 = vld [vmem:[#allocation6 + $0x40] sm:$0xff]
    %v178 = vld [vmem:[#allocation6 + $0x48] sm:$0xff]
    %v179 = vld [vmem:[#allocation6 + $0x50] sm:$0xff]
    %v180 = vld [vmem:[#allocation6 + $0x58] sm:$0xff]
    %v181 = vld [vmem:[#allocation6 + $0x60] sm:$0xff]
    %v182 = vld [vmem:[#allocation6 + $0x68] sm:$0xff]
    %v183 = vld [vmem:[#allocation6 + $0x70] sm:$0xff]
    %v184 = vld [vmem:[#allocation6 + $0x78] sm:$0xff]
    %v185 = vld [vmem:[%s3] sm:$0x1]
    %v187 = vperm.slane %v185, 0
    %189 = vmatpush.msra.mxu0 %v184
    %190 = vmatpush.msra.mxu0 %v183
    %191 = vmatpush.msra.mxu0 %v182
    %192 = vmatpush.msra.mxu0 %v181
    %193 = vmatpush.msra.mxu0 %v180
    %194 = vmatpush.msra.mxu0 %v179
    %195 = vmatpush.msra.mxu0 %v178
    %196 = vmatpush.msra.mxu0 %v177
    %197 = vmatpush.msra.mxu0 %v176
    %198 = vmatpush.msra.mxu0 %v175
    %199 = vmatpush.msra.mxu0 %v174
    %200 = vmatpush.msra.mxu0 %v173
    %201 = vmatpush.msra.mxu0 %v172
    %202 = vmatpush.msra.mxu0 %v171
    %203 = vmatpush.msra.mxu0 %v170
    %204 = vmatpush.msra.mxu0 %v169
    %205 = vmatmul.f32.gmra.mxu0 %v168
    %v206 = vpop.f32.mrf.mxu0
    %v207 = vadd.f32 %v187, %v206
    %208 = vdwg.mxu0
    %v209 = vmax.f32 %v207, 0.0
    %v210 = vld [vmem:[#allocation7] sm:$0xff]
    %v211 = vld [vmem:[#allocation7 + $0x8] sm:$0xff]
    %v212 = vld [vmem:[#allocation7 + $0x10] sm:$0xff]
    %v213 = vld [vmem:[#allocation7 + $0x18] sm:$0xff]
    %v214 = vld [vmem:[#allocation7 + $0x20] sm:$0xff]
    %v215 = vld [vmem:[#allocation7 + $0x28] sm:$0xff]
    %v216 = vld [vmem:[#allocation7 + $0x30] sm:$0xff]
    %v217 = vld [vmem:[#allocation7 + $0x38] sm:$0xff]
    %v218 = vld [vmem:[#allocation7 + $0x40] sm:$0xff]
    %v219 = vld [vmem:[#allocation7 + $0x48] sm:$0xff]
    %v220 = vld [vmem:[#allocation7 + $0x50] sm:$0xff]
    %v221 = vld [vmem:[#allocation7 + $0x58] sm:$0xff]
    %v222 = vld [vmem:[#allocation7 + $0x60] sm:$0xff]
    %v223 = vld [vmem:[#allocation7 + $0x68] sm:$0xff]
    %v224 = vld [vmem:[#allocation7 + $0x70] sm:$0xff]
    %v225 = vld [vmem:[#allocation7 + $0x78] sm:$0xff]
    %v226 = vld [vmem:[%s5] sm:$0x1]
    %v228 = vperm.slane %v226, 0
    %230 = vmatpush.msra.mxu0 %v225
    %231 = vmatpush.msra.mxu0 %v224
    %232 = vmatpush.msra.mxu0 %v223
    %233 = vmatpush.msra.mxu0 %v222
    %234 = vmatpush.msra.mxu0 %v221
    %235 = vmatpush.msra.mxu0 %v220
    %236 = vmatpush.msra.mxu0 %v219
    %237 = vmatpush.msra.mxu0 %v218
    %238 = vmatpush.msra.mxu0 %v217
    %239 = vmatpush.msra.mxu0 %v216
    %240 = vmatpush.msra.mxu0 %v215
    %241 = vmatpush.msra.mxu0 %v214
    %242 = vmatpush.msra.mxu0 %v213
    %243 = vmatpush.msra.mxu0 %v212
    %244 = vmatpush.msra.mxu0 %v211
    %245 = vmatpush.msra.mxu0 %v210
    %246 = vmatmul.f32.gmra.mxu0 %v209
    %v247 = vpop.f32.mrf.mxu0
    %v248 = vadd.f32 %v228, %v247
    %249 = vdwg.mxu0
    %v250 = vmax.f32 %v248, 0.0
    %v251 = vld [vmem:[#allocation4] sm:$0xff]
    %v252 = vld [vmem:[#allocation9] sm:$0xff]
    %v253 = vld [vmem:[#allocation9 + $0x8] sm:$0xff]
    %v254 = vld [vmem:[#allocation9 + $0x10] sm:$0xff]
    %v255 = vld [vmem:[#allocation9 + $0x18] sm:$0xff]
    %v256 = vld [vmem:[#allocation9 + $0x20] sm:$0xff]
    %v257 = vld [vmem:[#allocation9 + $0x28] sm:$0xff]
    %v258 = vld [vmem:[#allocation9 + $0x30] sm:$0xff]
    %v259 = vld [vmem:[#allocation9 + $0x38] sm:$0xff]
    %v260 = vld [vmem:[#allocation9 + $0x40] sm:$0xff]
    %v261 = vld [vmem:[#allocation9 + $0x48] sm:$0xff]
    %v262 = vld [vmem:[#allocation9 + $0x50] sm:$0xff]
    %v263 = vld [vmem:[#allocation9 + $0x58] sm:$0xff]
    %v264 = vld [vmem:[#allocation9 + $0x60] sm:$0xff]
    %v265 = vld [vmem:[#allocation9 + $0x68] sm:$0xff]
    %v266 = vld [vmem:[#allocation9 + $0x70] sm:$0xff]
    %v267 = vld [vmem:[#allocation9 + $0x78] sm:$0xff]
    %v268 = vld [vmem:[%s7] sm:$0x1]
    %v270 = vperm.slane %v268, 0
    %272 = vmatpush.msra.mxu0 %v267
    %273 = vmatpush.msra.mxu0 %v266
    %274 = vmatpush.msra.mxu0 %v265
    %275 = vmatpush.msra.mxu0 %v264
    %276 = vmatpush.msra.mxu0 %v263
    %277 = vmatpush.msra.mxu0 %v262
    %278 = vmatpush.msra.mxu0 %v261
    %279 = vmatpush.msra.mxu0 %v260
    %280 = vmatpush.msra.mxu0 %v259
    %281 = vmatpush.msra.mxu0 %v258
    %282 = vmatpush.msra.mxu0 %v257
    %283 = vmatpush.msra.mxu0 %v256
    %284 = vmatpush.msra.mxu0 %v255
    %285 = vmatpush.msra.mxu0 %v254
    %286 = vmatpush.msra.mxu0 %v253
    %287 = vmatpush.msra.mxu0 %v252
    %288 = vmatmul.f32.gmra.mxu0 %v251
    %v289 = vpop.f32.mrf.mxu0
    %v290 = vadd.f32 %v270, %v289
    %291 = vdwg.mxu0
    %v292 = vmax.f32 %v290, 0.0
    %v293 = vld [vmem:[#allocation10] sm:$0xff]
    %v294 = vld [vmem:[#allocation10 + $0x8] sm:$0xff]
    %v295 = vld [vmem:[#allocation10 + $0x10] sm:$0xff]
    %v296 = vld [vmem:[#allocation10 + $0x18] sm:$0xff]
    %v297 = vld [vmem:[#allocation10 + $0x20] sm:$0xff]
    %v298 = vld [vmem:[#allocation10 + $0x28] sm:$0xff]
    %v299 = vld [vmem:[#allocation10 + $0x30] sm:$0xff]
    %v300 = vld [vmem:[#allocation10 + $0x38] sm:$0xff]
    %v301 = vld [vmem:[#allocation10 + $0x40] sm:$0xff]
    %v302 = vld [vmem:[#allocation10 + $0x48] sm:$0xff]
    %v303 = vld [vmem:[#allocation10 + $0x50] sm:$0xff]
    %v304 = vld [vmem:[#allocation10 + $0x58] sm:$0xff]
    %v305 = vld [vmem:[#allocation10 + $0x60] sm:$0xff]
    %v306 = vld [vmem:[#allocation10 + $0x68] sm:$0xff]
    %v307 = vld [vmem:[#allocation10 + $0x70] sm:$0xff]
    %v308 = vld [vmem:[#allocation10 + $0x78] sm:$0xff]
    %v309 = vld [vmem:[%s9] sm:$0x1]
    %v311 = vperm.slane %v309, 0
    %313 = vmatpush.msra.mxu0 %v308
    %314 = vmatpush.msra.mxu0 %v307
    %315 = vmatpush.msra.mxu0 %v306
    %316 = vmatpush.msra.mxu0 %v305
    %317 = vmatpush.msra.mxu0 %v304
    %318 = vmatpush.msra.mxu0 %v303
    %319 = vmatpush.msra.mxu0 %v302
    %320 = vmatpush.msra.mxu0 %v301
    %321 = vmatpush.msra.mxu0 %v300
    %322 = vmatpush.msra.mxu0 %v299
    %323 = vmatpush.msra.mxu0 %v298
    %324 = vmatpush.msra.mxu0 %v297
    %325 = vmatpush.msra.mxu0 %v296
    %326 = vmatpush.msra.mxu0 %v295
    %327 = vmatpush.msra.mxu0 %v294
    %328 = vmatpush.msra.mxu0 %v293
    %329 = vmatmul.f32.gmra.mxu0 %v292
    %v330 = vpop.f32.mrf.mxu0
    %v331 = vadd.f32 %v311, %v330
    %332 = vdwg.mxu0
    %v333 = vmax.f32 %v331, 0.0
    %v334 = vld [vmem:[#allocation12] sm:$0xff]
    %v335 = vld [vmem:[#allocation12 + $0x8] sm:$0xff]
    %v336 = vld [vmem:[#allocation12 + $0x10] sm:$0xff]
    %v337 = vld [vmem:[#allocation12 + $0x18] sm:$0xff]
    %v338 = vld [vmem:[#allocation12 + $0x20] sm:$0xff]
    %v339 = vld [vmem:[#allocation12 + $0x28] sm:$0xff]
    %v340 = vld [vmem:[#allocation12 + $0x30] sm:$0xff]
    %v341 = vld [vmem:[#allocation12 + $0x38] sm:$0xff]
    %v342 = vld [vmem:[#allocation12 + $0x40] sm:$0xff]
    %v343 = vld [vmem:[#allocation12 + $0x48] sm:$0xff]
    %v344 = vld [vmem:[#allocation12 + $0x50] sm:$0xff]
    %v345 = vld [vmem:[#allocation12 + $0x58] sm:$0xff]
    %v346 = vld [vmem:[#allocation12 + $0x60] sm:$0xff]
    %v347 = vld [vmem:[#allocation12 + $0x68] sm:$0xff]
    %v348 = vld [vmem:[#allocation12 + $0x70] sm:$0xff]
    %v349 = vld [vmem:[#allocation12 + $0x78] sm:$0xff]
    %v350 = vld [vmem:[%s11] sm:$0x1]
    %v352 = vperm.slane %v350, 0
    %354 = vmatpush.msra.mxu0 %v349
    %355 = vmatpush.msra.mxu0 %v348
    %356 = vmatpush.msra.mxu0 %v347
    %357 = vmatpush.msra.mxu0 %v346
    %358 = vmatpush.msra.mxu0 %v345
    %359 = vmatpush.msra.mxu0 %v344
    %360 = vmatpush.msra.mxu0 %v343
    %361 = vmatpush.msra.mxu0 %v342
    %362 = vmatpush.msra.mxu0 %v341
    %363 = vmatpush.msra.mxu0 %v340
    %364 = vmatpush.msra.mxu0 %v339
    %365 = vmatpush.msra.mxu0 %v338
    %366 = vmatpush.msra.mxu0 %v337
    %367 = vmatpush.msra.mxu0 %v336
    %368 = vmatpush.msra.mxu0 %v335
    %369 = vmatpush.msra.mxu0 %v334
    %370 = vmatmul.f32.gmra.mxu0 %v250
    %v371 = vpop.f32.mrf.mxu0
    %v372 = vadd.f32 %v352, %v371
    %373 = vdwg.mxu0
    %v374 = vld [vmem:[#allocation13] sm:$0xff]
    %v375 = vld [vmem:[#allocation13 + $0x8] sm:$0xff]
    %v376 = vld [vmem:[#allocation13 + $0x10] sm:$0xff]
    %v377 = vld [vmem:[#allocation13 + $0x18] sm:$0xff]
    %v378 = vld [vmem:[#allocation13 + $0x20] sm:$0xff]
    %v379 = vld [vmem:[#allocation13 + $0x28] sm:$0xff]
    %v380 = vld [vmem:[#allocation13 + $0x30] sm:$0xff]
    %v381 = vld [vmem:[#allocation13 + $0x38] sm:$0xff]
    %v382 = vld [vmem:[#allocation13 + $0x40] sm:$0xff]
    %v383 = vld [vmem:[#allocation13 + $0x48] sm:$0xff]
    %v384 = vld [vmem:[#allocation13 + $0x50] sm:$0xff]
    %v385 = vld [vmem:[#allocation13 + $0x58] sm:$0xff]
    %v386 = vld [vmem:[#allocation13 + $0x60] sm:$0xff]
    %v387 = vld [vmem:[#allocation13 + $0x68] sm:$0xff]
    %v388 = vld [vmem:[#allocation13 + $0x70] sm:$0xff]
    %v389 = vld [vmem:[#allocation13 + $0x78] sm:$0xff]
    %v390 = vld [vmem:[%s13] sm:$0x1]
    %v392 = vperm.slane %v390, 0
    %394 = vmatpush.msra.mxu0 %v389
    %395 = vmatpush.msra.mxu0 %v388
    %396 = vmatpush.msra.mxu0 %v387
    %397 = vmatpush.msra.mxu0 %v386
    %398 = vmatpush.msra.mxu0 %v385
    %399 = vmatpush.msra.mxu0 %v384
    %400 = vmatpush.msra.mxu0 %v383
    %401 = vmatpush.msra.mxu0 %v382
    %402 = vmatpush.msra.mxu0 %v381
    %403 = vmatpush.msra.mxu0 %v380
    %404 = vmatpush.msra.mxu0 %v379
    %405 = vmatpush.msra.mxu0 %v378
    %406 = vmatpush.msra.mxu0 %v377
    %407 = vmatpush.msra.mxu0 %v376
    %408 = vmatpush.msra.mxu0 %v375
    %409 = vmatpush.msra.mxu0 %v374
    %410 = vmatmul.f32.gmra.mxu0 %v333
    %v411 = vpop.f32.mrf.mxu0
    %v412 = vadd.f32 %v392, %v411
    %413 = vdwg.mxu0
    %v414 = vmul.f32 %v372, %v412
    %vm415 = vcmask 523264
    %v416 = vsel %vm415, %v414, 0.0
    %417 = vadd.xlane.f32.xlu0 %v416
    %v418 = vpop.xlane.xlu0 %417
    %420 = vrot.lane.b32.xlu0 %v414, 64
    %v421 = vpop.permute.xlu0 %420
    %v423 = vsel %vm415, %v421, 0.0
    %424 = vadd.xlane.f32.xlu0 %v423
    %v425 = vpop.xlane.xlu0 %424
    %vm426 = vcmask 7168
    %v427 = vsel %vm426, %v418, %v425
    %vm428 = vcmask 15360
    %429 = vst.msk [vmem:[%s14] sm:$0xff] %vm428, %v427
    // Predicated region
    $region90: #{tpu_custom_call.1} parent=1 // pred_check
      _
    $region91: #{tpu_custom_call.1} parent=1 // pred_check_branch
      %431 = sbr.rel (0) target = $region93
    $region92: #{tpu_custom_call.1} parent=1 // pred_region
      _
    $region93: #{tpu_custom_call.1} parent=1 // pred_fallthru
      _
    // Predicated region
    $region94: #{tpu_custom_call.1} parent=1 // pred_check
      _
    $region95: #{tpu_custom_call.1} parent=1 // pred_check_branch
      %433 = sbr.rel (0) target = $region97
    $region96: #{tpu_custom_call.1} parent=1 // pred_region
      _
    $region97: #{tpu_custom_call.1} parent=1 // pred_fallthru
      _
    %434 = vsyncpa [#allocation3], 1
    %435 = vsyncpa [#allocation5], 1
    %436 = vsyncpa [#allocation8], 1
    %437 = vsyncpa [#allocation11], 1
    %438 = vsyncpa [#allocation14], 1

</llo_original>
